<compile_context>
chip_gen: v6e
topology: v6e:2x2x1
jax: 0.10.0
libtpu: 0.0.40
codegen_flags: <defaults>
</compile_context>

<pallas_src>
import functools

import jax
import jax.numpy as jnp
from jax.experimental import pallas as pl
from jax.experimental.pallas import tpu as pltpu

LANES = 128
SUBLANES = 8
IGNORE_INDEX = 255


def _iou_loss_kernel(out_ref, tgt_ref, loss_ref, num_acc, den_acc,
                     *, tile_rows, valid_rows, needs_row_mask):
    i = pl.program_id(0)

    @pl.when(i == 0)
    def _():
        num_acc[...] = jnp.zeros_like(num_acc)
        den_acc[...] = jnp.zeros_like(den_acc)

    o = out_ref[...].astype(jnp.float32)
    t = tgt_ref[...].astype(jnp.float32)

    keep = t != jnp.float32(IGNORE_INDEX)
    if needs_row_mask:
        # Last grid step reads past the real rows; zero those (jnp.where so
        # garbage NaN/Inf in the out-of-bounds region cannot leak through).
        row = i * tile_rows + jax.lax.broadcasted_iota(
            jnp.int32, (tile_rows, LANES), 0)
        keep = jnp.logical_and(keep, row < valid_rows)

    ot = o * t
    num_part = jnp.where(keep, ot, 0.0)
    den_part = jnp.where(keep, o + t - ot, 0.0)

    # Reduce (tile_rows, 128) -> (8, 128) with vreg-wise adds only; the
    # expensive cross-lane reduction happens once, at the very end.
    num_acc[...] += jnp.sum(num_part.reshape(-1, SUBLANES, LANES), axis=0)
    den_acc[...] += jnp.sum(den_part.reshape(-1, SUBLANES, LANES), axis=0)

    @pl.when(i == pl.num_programs(0) - 1)
    def _():
        num = jnp.sum(num_acc[...], keepdims=True)          # (1, 1)
        den = jnp.sum(den_acc[...], keepdims=True)          # (1, 1)
        loss_ref[...] = 1.0 - num * pl.reciprocal(den)


def iou_loss(outputs, targets, *, tile_rows=2048):
    assert outputs.shape == targets.shape
    n = outputs.size

    o_flat = outputs.reshape(-1)   # free: metadata-only reshape
    t_flat = targets.reshape(-1)

    # Pad only the tiny tail (< 1024 elements) and only when actually needed,
    # so rows are a multiple of 8. Zero padding contributes 0 to num and den
    # (relies on 0 != IGNORE_INDEX).
    row_chunk = SUBLANES * LANES
    pad = (-n) % row_chunk
    if pad:
        o_flat = jnp.pad(o_flat, (0, pad))
        t_flat = jnp.pad(t_flat, (0, pad))

    R = (n + pad) // LANES                       # multiple of 8
    o2 = o_flat.reshape(R, LANES)
    t2 = t_flat.reshape(R, LANES)

    tile = min(tile_rows, R)                     # multiple of 8
    grid = (pl.cdiv(R, tile),)
    needs_row_mask = (R % tile) != 0

    kernel = functools.partial(
        _iou_loss_kernel,
        tile_rows=tile,
        valid_rows=R,
        needs_row_mask=needs_row_mask,
    )

    loss = pl.pallas_call(
        kernel,
        out_shape=jax.ShapeDtypeStruct((1, 1), jnp.float32),
        grid_spec=pltpu.PrefetchScalarGridSpec(
            num_scalar_prefetch=0,
            grid=grid,
            in_specs=[
                pl.BlockSpec((tile, LANES), lambda i: (i, 0)),
                pl.BlockSpec((tile, LANES), lambda i: (i, 0)),
            ],
            out_specs=pl.BlockSpec((1, 1), lambda i: (0, 0)),
            scratch_shapes=[
                pltpu.VMEM((SUBLANES, LANES), jnp.float32),
                pltpu.VMEM((SUBLANES, LANES), jnp.float32),
            ],
        ),
        compiler_params=pltpu.CompilerParams(
            dimension_semantics=("arbitrary",),
        ),
    )(o2, t2)
    return loss[0, 0]


def iou_loss_ref(outputs, targets):
    o = outputs.astype(jnp.float32)
    t = targets.astype(jnp.float32)
    mask = (t != IGNORE_INDEX).astype(jnp.float32)
    num = jnp.sum(o * t * mask)
    den = jnp.sum(o * mask + t * mask - o * t * mask)
    return 1.0 - num / den


if __name__ == "__main__":
    key = jax.random.PRNGKey(0)
    k1, k2, k3 = jax.random.split(key, 3)

    B, C, H, W = 2, 4, 16, 16  # NCHW, like PyTorch
    outputs = jax.random.uniform(k1, (B, C, H, W), dtype=jnp.float32)
    # binary-ish targets with some ignore_index pixels sprinkled in
    targets = (jax.random.uniform(k2, (B, C, H, W)) > 0.5).astype(jnp.float32)
    ignore_mask = jax.random.uniform(k3, (B, C, H, W)) > 0.9
    targets = jnp.where(ignore_mask, jnp.float32(IGNORE_INDEX), targets)

    loss = jax.block_until_ready(iou_loss(outputs, targets))
    ref = jax.block_until_ready(iou_loss_ref(outputs, targets))

    assert jnp.allclose(loss, ref, rtol=1e-5, atol=1e-6), (loss, ref)
    print("KERNEL_OK")
</pallas_src>

<mosaic_0001>
module attributes {stable_mosaic.version = 11 : i64} {
  func.func @_iou_loss_kernel(%arg0: i32, %arg1: memref<16x128xf32, #tpu.memory_space<vmem>>, %arg2: memref<16x128xf32, #tpu.memory_space<vmem>>, %arg3: memref<1x1xf32, #tpu.memory_space<vmem>>, %arg4: memref<8x128xf32, #tpu.memory_space<vmem>>, %arg5: memref<8x128xf32, #tpu.memory_space<vmem>>) attributes {dimension_semantics = [#tpu.dimension_semantics<arbitrary>], iteration_bounds = array<i64: 1>, scalar_prefetch = 0 : i64, scratch_operands = 2 : i64, tpu.core_type = #tpu.core_type<tc>, window_params = [{transform_indices = @transform_0, window_bounds = array<i64: 16, 128>}, {transform_indices = @transform_1, window_bounds = array<i64: 16, 128>}, {pipeline_mode = #tpu.pipeline_mode<synchronous>, transform_indices = @transform_2, window_bounds = array<i64: 1, 1>}]} {
    %c0_i32 = arith.constant 0 : i32
    %0 = arith.cmpi eq, %arg0, %c0_i32 : i32
    %1 = arith.extui %0 : i1 to i32
    %c0_i32_0 = arith.constant 0 : i32
    %2 = arith.cmpi ne, %1, %c0_i32_0 : i32
    scf.if %2 {
      %cst_18 = arith.constant 0.000000e+00 : f32
      %27 = vector.broadcast %cst_18 : f32 to vector<8x128xf32>
      %c0_19 = arith.constant 0 : index
      %c0_20 = arith.constant 0 : index
      %28 = vector.load %arg4[%c0_19, %c0_20] : memref<8x128xf32, #tpu.memory_space<vmem>>, vector<8x128xf32>
      tpu.vector_store %arg4[%c0_19, %c0_20], %27 {strides = array<i32>} : memref<8x128xf32, #tpu.memory_space<vmem>>, vector<8x128xf32>,
      %cst_21 = arith.constant 0.000000e+00 : f32
      %29 = vector.broadcast %cst_21 : f32 to vector<8x128xf32>
      %c0_22 = arith.constant 0 : index
      %c0_23 = arith.constant 0 : index
      %30 = vector.load %arg5[%c0_22, %c0_23] : memref<8x128xf32, #tpu.memory_space<vmem>>, vector<8x128xf32>
      tpu.vector_store %arg5[%c0_22, %c0_23], %29 {strides = array<i32>} : memref<8x128xf32, #tpu.memory_space<vmem>>, vector<8x128xf32>,
    } else {
    }
    %c0 = arith.constant 0 : index
    %c0_1 = arith.constant 0 : index
    %3 = vector.load %arg1[%c0, %c0_1] : memref<16x128xf32, #tpu.memory_space<vmem>>, vector<16x128xf32>
    %c0_2 = arith.constant 0 : index
    %c0_3 = arith.constant 0 : index
    %4 = vector.load %arg2[%c0_2, %c0_3] : memref<16x128xf32, #tpu.memory_space<vmem>>, vector<16x128xf32>
    %cst = arith.constant 2.550000e+02 : f32
    %5 = vector.broadcast %cst : f32 to vector<16x128xf32>
    %6 = arith.cmpf one, %4, %5 : vector<16x128xf32>
    %7 = arith.mulf %3, %4 : vector<16x128xf32>
    %cst_4 = arith.constant 0.000000e+00 : f32
    %8 = vector.broadcast %cst_4 : f32 to vector<16x128xf32>
    %9 = arith.select %6, %7, %8 : vector<16x128xi1>, vector<16x128xf32>
    %10 = arith.addf %3, %4 : vector<16x128xf32>
    %11 = arith.subf %10, %7 : vector<16x128xf32>
    %cst_5 = arith.constant 0.000000e+00 : f32
    %12 = vector.broadcast %cst_5 : f32 to vector<16x128xf32>
    %13 = arith.select %6, %11, %12 : vector<16x128xi1>, vector<16x128xf32>
    %c0_6 = arith.constant 0 : index
    %c0_7 = arith.constant 0 : index
    %14 = vector.load %arg4[%c0_6, %c0_7] : memref<8x128xf32, #tpu.memory_space<vmem>>, vector<8x128xf32>
    %15 = vector.shape_cast %9 : vector<16x128xf32> to vector<2x8x128xf32>
    %cst_8 = arith.constant dense<0.000000e+00> : vector<8x128xf32>
    %16 = vector.multi_reduction <add>, %15, %cst_8 [0] : vector<2x8x128xf32> to vector<8x128xf32>
    %17 = arith.addf %14, %16 : vector<8x128xf32>
    %c0_9 = arith.constant 0 : index
    %c0_10 = arith.constant 0 : index
    %18 = vector.load %arg4[%c0_9, %c0_10] : memref<8x128xf32, #tpu.memory_space<vmem>>, vector<8x128xf32>
    tpu.vector_store %arg4[%c0_9, %c0_10], %17 {strides = array<i32>} : memref<8x128xf32, #tpu.memory_space<vmem>>, vector<8x128xf32>,
    %c0_11 = arith.constant 0 : index
    %c0_12 = arith.constant 0 : index
    %19 = vector.load %arg5[%c0_11, %c0_12] : memref<8x128xf32, #tpu.memory_space<vmem>>, vector<8x128xf32>
    %20 = vector.shape_cast %13 : vector<16x128xf32> to vector<2x8x128xf32>
    %cst_13 = arith.constant dense<0.000000e+00> : vector<8x128xf32>
    %21 = vector.multi_reduction <add>, %20, %cst_13 [0] : vector<2x8x128xf32> to vector<8x128xf32>
    %22 = arith.addf %19, %21 : vector<8x128xf32>
    %c0_14 = arith.constant 0 : index
    %c0_15 = arith.constant 0 : index
    %23 = vector.load %arg5[%c0_14, %c0_15] : memref<8x128xf32, #tpu.memory_space<vmem>>, vector<8x128xf32>
    tpu.vector_store %arg5[%c0_14, %c0_15], %22 {strides = array<i32>} : memref<8x128xf32, #tpu.memory_space<vmem>>, vector<8x128xf32>,
    %c0_i32_16 = arith.constant 0 : i32
    %24 = arith.cmpi eq, %arg0, %c0_i32_16 : i32
    %25 = arith.extui %24 : i1 to i32
    %c0_i32_17 = arith.constant 0 : i32
    %26 = arith.cmpi ne, %25, %c0_i32_17 : i32
    scf.if %26 {
      %c0_18 = arith.constant 0 : index
      %c0_19 = arith.constant 0 : index
      %27 = vector.load %arg4[%c0_18, %c0_19] : memref<8x128xf32, #tpu.memory_space<vmem>>, vector<8x128xf32>
      %28 = vector.shape_cast %27 : vector<8x128xf32> to vector<1x8x128xf32>
      %cst_20 = arith.constant dense<0.000000e+00> : vector<1xf32>
      %29 = vector.multi_reduction <add>, %28, %cst_20 [1, 2] : vector<1x8x128xf32> to vector<1xf32>
      %30 = vector.shape_cast %29 : vector<1xf32> to vector<1x1x1xf32>
      %31 = vector.extract %30[0, 0, 0] : f32 from vector<1x1x1xf32>
      %32 = vector.broadcast %31 : f32 to vector<1x1xf32>
      %c0_21 = arith.constant 0 : index
      %c0_22 = arith.constant 0 : index
      %33 = vector.load %arg5[%c0_21, %c0_22] : memref<8x128xf32, #tpu.memory_space<vmem>>, vector<8x128xf32>
      %34 = vector.shape_cast %33 : vector<8x128xf32> to vector<1x8x128xf32>
      %cst_23 = arith.constant dense<0.000000e+00> : vector<1xf32>
      %35 = vector.multi_reduction <add>, %34, %cst_23 [1, 2] : vector<1x8x128xf32> to vector<1xf32>
      %36 = vector.shape_cast %35 : vector<1xf32> to vector<1x1x1xf32>
      %37 = vector.extract %36[0, 0, 0] : f32 from vector<1x1x1xf32>
      %38 = vector.broadcast %37 : f32 to vector<1x1xf32>
      %39 = tpu.reciprocal %38 : vector<1x1xf32> -> vector<1x1xf32>
      %40 = arith.mulf %32, %39 : vector<1x1xf32>
      %cst_24 = arith.constant 1.000000e+00 : f32
      %41 = vector.broadcast %cst_24 : f32 to vector<1x1xf32>
      %42 = arith.subf %41, %40 : vector<1x1xf32>
      %c0_25 = arith.constant 0 : index
      %c0_26 = arith.constant 0 : index
      %43 = vector.load %arg3[%c0_25, %c0_26] : memref<1x1xf32, #tpu.memory_space<vmem>>, vector<1x1xf32>
      tpu.vector_store %arg3[%c0_25, %c0_26], %42 {strides = array<i32>} : memref<1x1xf32, #tpu.memory_space<vmem>>, vector<1x1xf32>,
    } else {
    }
    return
  }
  func.func @transform_0(%arg0: i32) -> (i32, i32) {
    %c0_i32 = arith.constant 0 : i32
    %c0_i32_0 = arith.constant 0 : i32
    return %arg0, %c0_i32 : i32, i32
  }
  func.func @transform_1(%arg0: i32) -> (i32, i32) {
    %c0_i32 = arith.constant 0 : i32
    %c0_i32_0 = arith.constant 0 : i32
    return %arg0, %c0_i32 : i32, i32
  }
  func.func @transform_2(%arg0: i32) -> (i32, i32) {
    %c0_i32 = arith.constant 0 : i32
    %c0_i32_0 = arith.constant 0 : i32
    %c0_i32_1 = arith.constant 0 : i32
    return %c0_i32, %c0_i32_0 : i32, i32
  }
}

</mosaic_0001>

<llo_original>
// kernel: tpu_custom_call.1
$region0: #{tpu_custom_call.1}
  #allocation0 [shape = 'u32[]', space=smem, size = 0x4, offset = 0x4, fixed_abs, tag = 'smem constant byte address 0x4 - core index']
  #allocation1 [shape = 'u32[144,128]{1,0:T(1,128)}', space=vmem, size = 0x12000, scoped, tag = 'internal scratch']
  #allocation2 [shape = 'f32[8,128]{1,0:T(8,128)}', space=vmem, size = 0x1000, scoped, tag = 'scratch operand']
  #allocation3 [shape = 'f32[8,128]{1,0:T(8,128)}', space=vmem, size = 0x1000, scoped, tag = 'scratch operand']
  %s0 = inlined_call_operand.hbm [shape: f32[16,128], index: 0, kind: input, shape index: {}]
  %s1 = inlined_call_operand.hbm [shape: f32[16,128], index: 1, kind: input, shape index: {}]
  %s2 = inlined_call_operand.hbm [shape: f32[1,1], index: 2, kind: output, shape index: {}]
  %s3 = sld [smem:[#allocation0]]
  $region34: #{tpu_custom_call.1} parent=0
    _
  %s5 = ssub.s32 1, %s3
  %s6 = scalar_select 0, %s5, %s3
  $region1: #{tpu_custom_call.1} parent=0
    #allocation4 [shape = 'u8[8192]{0}', space=vmem, size = 0x2000, scoped, tag = 'input window, operand 0, single buffered']
    #allocation5 [shape = 's32[1]{0}', space=sflag, size = 0x4, scoped, tag = 'scoped memory for tpu_custom_call.1']
    #allocation6 [shape = 's32[1]{0}', space=sflag, size = 0x4, scoped, tag = 'scoped memory for tpu_custom_call.1']
    #allocation7 [shape = 'u8[8192]{0}', space=vmem, size = 0x2000, scoped, tag = 'input window, operand 1, single buffered']
    #allocation8 [shape = 's32[1]{0}', space=sflag, size = 0x4, scoped, tag = 'scoped memory for tpu_custom_call.1']
    #allocation9 [shape = 'u8[512]{0}', space=vmem, size = 0x400, scoped, tag = 'output window, operand 0, single buffered']
    %7 = vsyncpa [#allocation5], 0
    %8 = vsyncpa [#allocation8], 0
    %9 = vsyncpa [#allocation6], 0
    // Predicated region
    $region2: #{tpu_custom_call.1} parent=1 // pred_check
      _
    $region3: #{tpu_custom_call.1} parent=1 // pred_check_branch
      %11 = sbr.rel (0) target = $region5
    $region4: #{tpu_custom_call.1} parent=1 // pred_region
      %s13 = ssub.s32 256, 256
      %14 = vsyncadd [#allocation5], %s13
      %s15 = sshll.u32 [#allocation4], 4
      %s16 = int_to_ptr.vmem [resolvable:$true] %s15
      %21 = dma.hbm_to_vmem [thread:$0]  %s0, 256, %s16, [#allocation5], 128, 128, 8
    $region5: #{tpu_custom_call.1} parent=1 // pred_fallthru
      _
    // Predicated region
    $region6: #{tpu_custom_call.1} parent=1 // pred_check
      _
    $region7: #{tpu_custom_call.1} parent=1 // pred_check_branch
      %23 = sbr.rel (0) target = $region9
    $region8: #{tpu_custom_call.1} parent=1 // pred_region
      %s25 = ssub.s32 256, 256
      %26 = vsyncadd [#allocation8], %s25
      %s27 = sshll.u32 [#allocation7], 4
      %s28 = int_to_ptr.vmem [resolvable:$true] %s27
      %33 = dma.hbm_to_vmem [thread:$0]  %s1, 256, %s28, [#allocation8], 128, 128, 8
    $region9: #{tpu_custom_call.1} parent=1 // pred_fallthru
      _
    // Predicated region
    $region10: #{tpu_custom_call.1} parent=1 // pred_check
      _
    $region11: #{tpu_custom_call.1} parent=1 // pred_check_branch
      %35 = sbr.rel (0) target = $region13
    $region12: #{tpu_custom_call.1} parent=1 // pred_region
      %36 = dma.done [#allocation5], 256
    $region13: #{tpu_custom_call.1} parent=1 // pred_fallthru
      _
    // Predicated region
    $region14: #{tpu_custom_call.1} parent=1 // pred_check
      _
    $region15: #{tpu_custom_call.1} parent=1 // pred_check_branch
      %38 = sbr.rel (0) target = $region17
    $region16: #{tpu_custom_call.1} parent=1 // pred_region
      %39 = dma.done [#allocation8], 256
    $region17: #{tpu_custom_call.1} parent=1 // pred_fallthru
      _
    %p40 = scmp.eq.s32.totalorder 0, 0
    // Predicated region
    $region18: #{tpu_custom_call.1} parent=1 // pred_check
      %p41 = pneg %p40
    $region19: #{tpu_custom_call.1} parent=1 // pred_check_branch
      %43 = sbr.rel (%p41) target = $region21
    $region20: #{tpu_custom_call.1} parent=1 // pred_region
      %44 = vst [vmem:[#allocation2] sm:$0xff] 0.0
      %45 = vst [vmem:[#allocation3] sm:$0xff] 0.0
    $region21: #{tpu_custom_call.1} parent=1 // pred_fallthru
      _
    %v46 = vld [vmem:[#allocation4] sm:$0xff]
    %v47 = vld [vmem:[#allocation4 + $0x8] sm:$0xff]
    %v48 = vld [vmem:[#allocation7] sm:$0xff]
    %v49 = vld [vmem:[#allocation7 + $0x8] sm:$0xff]
    %vm50 = vcmp.ne.f32.partialorder %v48, 255.0
    %vm51 = vcmp.ne.f32.partialorder %v49, 255.0
    %v52 = vmul.f32 %v46, %v48
    %v53 = vmul.f32 %v47, %v49
    %v54 = vsel %vm50, %v52, 0.0
    %v55 = vsel %vm51, %v53, 0.0
    %v56 = vadd.f32 %v46, %v48
    %v57 = vadd.f32 %v47, %v49
    %v58 = vsub.f32 %v56, %v52
    %v59 = vsub.f32 %v57, %v53
    %v60 = vsel %vm50, %v58, 0.0
    %v61 = vsel %vm51, %v59, 0.0
    %v62 = vld [vmem:[#allocation2] sm:$0xff]
    %v63 = vadd.f32 %v54, %v55
    %v64 = vadd.f32 %v62, %v63
    %65 = vst [vmem:[#allocation2] sm:$0xff] %v64
    %v66 = vld [vmem:[#allocation3] sm:$0xff]
    %v67 = vadd.f32 %v60, %v61
    %v68 = vadd.f32 %v66, %v67
    %69 = vst [vmem:[#allocation3] sm:$0xff] %v68
    // Predicated region
    $region22: #{tpu_custom_call.1} parent=1 // pred_check
      %p70 = pneg %p40
    $region23: #{tpu_custom_call.1} parent=1 // pred_check_branch
      %72 = sbr.rel (%p70) target = $region25
    $region24: #{tpu_custom_call.1} parent=1 // pred_region
      %v73 = vld [vmem:[#allocation2] sm:$0xff]
      %74 = vadd.xlane.f32.xlu0 %v73
      %v75 = vpop.xlane.xlu0 %74
      %v76 = vrot.slane %v75, 4
      %v77 = vadd.f32 %v75, %v76
      %v78 = vrot.slane %v77, 2
      %v79 = vadd.f32 %v77, %v78
      %v80 = vrot.slane %v79, 1
      %v81 = vadd.f32 %v79, %v80
      %s82 = vtos %v81
      %v83 = vstv %s82
      %v84 = vld [vmem:[#allocation3] sm:$0xff]
      %85 = vadd.xlane.f32.xlu0 %v84
      %v86 = vpop.xlane.xlu0 %85
      %v87 = vrot.slane %v86, 4
      %v88 = vadd.f32 %v86, %v87
      %v89 = vrot.slane %v88, 2
      %v90 = vadd.f32 %v88, %v89
      %v91 = vrot.slane %v90, 1
      %v92 = vadd.f32 %v90, %v91
      %s93 = vtos %v92
      %v94 = vstv %s93
      %v95 = vrcp.pop %v94
      %v96 = vmul.f32 %v83, %v95
      %v97 = vsub.f32 1.0, %v96
      %vm98 = vcmask 0
      %99 = vst.msk [vmem:[#allocation9] sm:$0x1] %vm98, %v97
    $region25: #{tpu_custom_call.1} parent=1 // pred_fallthru
      _
    // Predicated region
    $region26: #{tpu_custom_call.1} parent=1 // pred_check
      _
    $region27: #{tpu_custom_call.1} parent=1 // pred_check_branch
      %101 = sbr.rel (0) target = $region29
    $region28: #{tpu_custom_call.1} parent=1 // pred_region
      %s103 = ssub.s32 16, 16
      %104 = vsyncadd [#allocation6], %s103
      %s106 = sshll.u32 [#allocation9], 4
      %s107 = int_to_ptr.vmem [resolvable:$true] %s106
      %109 = dma.vmem_to_hbm [thread:$0]  %s107, 16, %s2, [#allocation6]
    $region29: #{tpu_custom_call.1} parent=1 // pred_fallthru
      _
    // Predicated region
    $region30: #{tpu_custom_call.1} parent=1 // pred_check
      _
    $region31: #{tpu_custom_call.1} parent=1 // pred_check_branch
      %111 = sbr.rel (0) target = $region33
    $region32: #{tpu_custom_call.1} parent=1 // pred_region
      %112 = dma.done [#allocation6], 16
    $region33: #{tpu_custom_call.1} parent=1 // pred_fallthru
      _
    %113 = vsyncpa [#allocation5], 1
    %114 = vsyncpa [#allocation8], 1
    %115 = vsyncpa [#allocation6], 1

</llo_original>
